<compile_context>
chip_gen: v7x
topology: tpu7x:2x2x1
jax: 0.10.0
libtpu: 0.0.40
codegen_flags: <defaults>
</compile_context>

<pallas_src>
import math
import jax
import jax.numpy as jnp
from jax import lax
from jax.experimental import pallas as pl
from jax.experimental.pallas import tpu as pltpu

LANE = 128      # TPU lane width (batch axis of the transposed output)
SUBLANE = 16    # bf16 sublane packing (rows of the obs tile)


def _round_up(x, m):
    return ((x + m - 1) // m) * m


def actor_kernel(obs_ref, w1_ref, b1_ref, w2_ref, b2_ref, w3t_ref, b3t_ref, out_ref):
    # Layer 1: bf16 x bf16 matmul on the MXU, f32 accumulate; bias+ReLU in f32 (VPU).
    h1 = jnp.dot(obs_ref[...], w1_ref[...], preferred_element_type=jnp.float32)
    h1 = jnp.maximum(h1 + b1_ref[...], 0.0)
    # Layer 2: cast activation to bf16 so the MXU keeps its bf16 rate.
    h2 = jnp.dot(h1.astype(jnp.bfloat16), w2_ref[...],
                 preferred_element_type=jnp.float32)
    h2 = jnp.maximum(h2 + b2_ref[...], 0.0)
    # Layer 3, transposed: y_t[a, b] = sum_k w3t[a, k] * h2[b, k]
    #   -> output block (act_pad, TB): lane-dense (TB % 128 == 0 or full dim),
    #      only the real action rows hit HBM (no 128-col f32 padding written).
    y_t = lax.dot_general(
        w3t_ref[...], h2.astype(jnp.bfloat16),
        dimension_numbers=(((1,), (1,)), ((), ())),
        preferred_element_type=jnp.float32)
    out_ref[...] = (y_t + b3t_ref[...]).astype(out_ref.dtype)


def actor_forward(obs, params, *, tb=1024):
    """Fused 3-layer MLP forward: batch grid, VMEM-resident weights, transposed output."""
    B, obs_dim = obs.shape
    h1_dim = params["w1"].shape[1]
    h2_dim = params["w2"].shape[1]
    act_dim = params["w3"].shape[1]

    # ---- batch tiling ----
    # Batch is the LANE axis of the transposed output, so tiles that don't
    # cover the whole (padded) batch must be multiples of 128.
    if B <= 2 * LANE:
        # Tiny / latency path: single block, minimal padding (bf16 sublane mult).
        n_steps = 1
        TB = _round_up(max(B, 1), SUBLANE)
    else:
        tiles128 = -(-B // LANE)                 # 128-row groups covering B
        n_steps = max(-(-B // tb), 2)            # tile <= tb and >=2 steps (v7x: 2 TCs)
        tiles_per_step = -(-tiles128 // n_steps)
        n_steps = -(-tiles128 // tiles_per_step)  # actual step count
        TB = tiles_per_step * LANE
    B_pad = n_steps * TB
    obs_p = obs if B_pad == B else jnp.pad(obs, ((0, B_pad - B), (0, 0)))

    # ---- layer-3 transposed weights/bias (act_dim padded to sublane mult of 8) ----
    act_pad = _round_up(act_dim, 8)
    w3t = params["w3"].T            # (act_dim, h2_dim)
    b3t = params["b3"].T            # (act_dim, 1)
    if act_pad != act_dim:
        w3t = jnp.pad(w3t, ((0, act_pad - act_dim), (0, 0)))
        b3t = jnp.pad(b3t, ((0, act_pad - act_dim), (0, 0)))

    # ---- bf16 matmul operands; biases / epilogue stay f32 ----
    obs_b = obs_p.astype(jnp.bfloat16)
    w1 = params["w1"].astype(jnp.bfloat16)
    w2 = params["w2"].astype(jnp.bfloat16)
    w3t = w3t.astype(jnp.bfloat16)
    b1 = params["b1"]
    b2 = params["b2"]
    b3t = b3t.astype(jnp.float32)

    const = lambda i: (0, 0)   # weights/biases: same block every step -> VMEM-resident

    flops = 2 * B_pad * (obs_dim * h1_dim + h1_dim * h2_dim + h2_dim * act_pad)
    bytes_accessed = (obs_b.size * 2 + w1.size * 2 + w2.size * 2 + w3t.size * 2
                      + (b1.size + b2.size + b3t.size) * 4
                      + B_pad * act_pad * 4)     # transposed output: 8 f32 per row

    out_t = pl.pallas_call(
        actor_kernel,
        out_shape=jax.ShapeDtypeStruct((act_pad, B_pad), jnp.float32),
        grid=(n_steps,),
        in_specs=[
            pl.BlockSpec((TB, obs_dim), lambda i: (i, 0)),   # obs tile (pipelined)
            pl.BlockSpec((obs_dim, h1_dim), const),          # w1 (resident)
            pl.BlockSpec((1, h1_dim), const),                # b1
            pl.BlockSpec((h1_dim, h2_dim), const),           # w2
            pl.BlockSpec((1, h2_dim), const),                # b2
            pl.BlockSpec((act_pad, h2_dim), const),          # w3^T (resident)
            pl.BlockSpec((act_pad, 1), const),               # b3^T
        ],
        out_specs=pl.BlockSpec((act_pad, TB), lambda i: (0, i)),
        compiler_params=pltpu.CompilerParams(
            dimension_semantics=("parallel",)),  # v7x: shard batch across both TCs
        cost_estimate=pl.CostEstimate(
            flops=flops, transcendentals=0, bytes_accessed=bytes_accessed),
    )(obs_b, w1, b1, w2, b2, w3t, b3t)

    # Un-transpose the small (act, B) result and drop padding.
    return out_t[:act_dim, :B].T


def init_actor_params(key, obs_dim, act_dim, hidden=(128, 128)):
    """Deterministic init mirroring PyTorch nn.Linear default (uniform +/- 1/sqrt(fan_in))."""
    dims = [obs_dim, *hidden, act_dim]
    params = {}
    for i in range(3):
        fan_in, fan_out = dims[i], dims[i + 1]
        key, kw, kb = jax.random.split(key, 3)
        bound = 1.0 / math.sqrt(fan_in)
        params[f"w{i+1}"] = jax.random.uniform(
            kw, (fan_in, fan_out), jnp.float32, minval=-bound, maxval=bound)
        params[f"b{i+1}"] = jax.random.uniform(
            kb, (1, fan_out), jnp.float32, minval=-bound, maxval=bound)
    return params


def actor_forward_ref_f32(obs, p):
    h1 = jnp.maximum(obs @ p["w1"] + p["b1"], 0.0)
    h2 = jnp.maximum(h1 @ p["w2"] + p["b2"], 0.0)
    return h2 @ p["w3"] + p["b3"]


def actor_forward_ref_bf16(obs, p):
    """Same numerics as the kernel (bf16 matmul inputs, f32 accumulate)."""
    bf = jnp.bfloat16
    h1 = jnp.maximum(jnp.dot(obs.astype(bf), p["w1"].astype(bf),
                             preferred_element_type=jnp.float32) + p["b1"], 0.0)
    h2 = jnp.maximum(jnp.dot(h1.astype(bf), p["w2"].astype(bf),
                             preferred_element_type=jnp.float32) + p["b2"], 0.0)
    return jnp.dot(h2.astype(bf), p["w3"].astype(bf),
                   preferred_element_type=jnp.float32) + p["b3"]


if __name__ == "__main__":
    B, OBS_DIM, ACT_DIM = 2, 32, 8

    key = jax.random.PRNGKey(0)
    key, k_obs = jax.random.split(key)
    obs = jax.random.normal(k_obs, (B, OBS_DIM), jnp.float32)
    params = init_actor_params(key, OBS_DIM, ACT_DIM)

    out = actor_forward(obs, params)
    out = jax.block_until_ready(out)

    assert out.shape == (B, ACT_DIM)
    # Tight check vs. a reference using the same bf16-input / f32-accum numerics.
    ref_bf16 = actor_forward_ref_bf16(obs, params)
    assert jnp.allclose(out, ref_bf16, atol=1e-3, rtol=1e-3), "mismatch vs bf16 reference"
    # Loose sanity check vs. the full-f32 PyTorch-equivalent forward.
    ref_f32 = actor_forward_ref_f32(obs, params)
    assert jnp.allclose(out, ref_f32, atol=5e-2, rtol=5e-2), "mismatch vs f32 reference"

    print("KERNEL_OK")
</pallas_src>

<mosaic_0001>
module attributes {stable_mosaic.version = 11 : i64} {
  func.func @actor_kernel(%arg0: i32, %arg1: memref<16x32xbf16, #tpu.memory_space<vmem>>, %arg2: memref<32x128xbf16, #tpu.memory_space<vmem>>, %arg3: memref<1x128xf32, #tpu.memory_space<vmem>>, %arg4: memref<128x128xbf16, #tpu.memory_space<vmem>>, %arg5: memref<1x128xf32, #tpu.memory_space<vmem>>, %arg6: memref<8x128xbf16, #tpu.memory_space<vmem>>, %arg7: memref<8x1xf32, #tpu.memory_space<vmem>>, %arg8: memref<8x16xf32, #tpu.memory_space<vmem>>) attributes {dimension_semantics = [#tpu.dimension_semantics<parallel>], iteration_bounds = array<i64: 1>, scalar_prefetch = 0 : i64, scratch_operands = 0 : i64, tpu.core_type = #tpu.core_type<tc>, window_params = [{transform_indices = @transform_0, window_bounds = array<i64: 16, 32>}, {pipeline_mode = #tpu.pipeline_mode<synchronous>, transform_indices = @transform_1, window_bounds = array<i64: 32, 128>}, {pipeline_mode = #tpu.pipeline_mode<synchronous>, transform_indices = @transform_2, window_bounds = array<i64: 1, 128>}, {pipeline_mode = #tpu.pipeline_mode<synchronous>, transform_indices = @transform_3, window_bounds = array<i64: 128, 128>}, {pipeline_mode = #tpu.pipeline_mode<synchronous>, transform_indices = @transform_4, window_bounds = array<i64: 1, 128>}, {pipeline_mode = #tpu.pipeline_mode<synchronous>, transform_indices = @transform_5, window_bounds = array<i64: 8, 128>}, {pipeline_mode = #tpu.pipeline_mode<synchronous>, transform_indices = @transform_6, window_bounds = array<i64: 8, 1>}, {transform_indices = @transform_7, window_bounds = array<i64: 8, 16>}]} {
    %c0 = arith.constant 0 : index
    %c0_0 = arith.constant 0 : index
    %0 = vector.load %arg1[%c0, %c0_0] : memref<16x32xbf16, #tpu.memory_space<vmem>>, vector<16x32xbf16>
    %c0_1 = arith.constant 0 : index
    %c0_2 = arith.constant 0 : index
    %1 = vector.load %arg2[%c0_1, %c0_2] : memref<32x128xbf16, #tpu.memory_space<vmem>>, vector<32x128xbf16>
    %cst = arith.constant dense<0.000000e+00> : vector<16x128xf32>
    %2 = tpu.matmul %0, %1, %cst {dimension_numbers = #tpu.dot_dimension_numbers<[1], [0], [0], [1], [0, 0, 1, 1], [], []>} : vector<16x32xbf16>, vector<32x128xbf16>, vector<16x128xf32> -> vector<16x128xf32>
    %c0_3 = arith.constant 0 : index
    %c0_4 = arith.constant 0 : index
    %3 = vector.load %arg3[%c0_3, %c0_4] : memref<1x128xf32, #tpu.memory_space<vmem>>, vector<1x128xf32>
    %4 = vector.broadcast %3 : vector<1x128xf32> to vector<16x128xf32>
    %5 = arith.addf %2, %4 : vector<16x128xf32>
    %cst_5 = arith.constant 0.000000e+00 : f32
    %6 = vector.broadcast %cst_5 : f32 to vector<16x128xf32>
    %7 = arith.maximumf %5, %6 : vector<16x128xf32>
    %8 = arith.truncf %7 : vector<16x128xf32> to vector<16x128xbf16>
    %c0_6 = arith.constant 0 : index
    %c0_7 = arith.constant 0 : index
    %9 = vector.load %arg4[%c0_6, %c0_7] : memref<128x128xbf16, #tpu.memory_space<vmem>>, vector<128x128xbf16>
    %cst_8 = arith.constant dense<0.000000e+00> : vector<16x128xf32>
    %10 = tpu.matmul %8, %9, %cst_8 {dimension_numbers = #tpu.dot_dimension_numbers<[1], [0], [0], [1], [0, 0, 1, 1], [], []>} : vector<16x128xbf16>, vector<128x128xbf16>, vector<16x128xf32> -> vector<16x128xf32>
    %c0_9 = arith.constant 0 : index
    %c0_10 = arith.constant 0 : index
    %11 = vector.load %arg5[%c0_9, %c0_10] : memref<1x128xf32, #tpu.memory_space<vmem>>, vector<1x128xf32>
    %12 = vector.broadcast %11 : vector<1x128xf32> to vector<16x128xf32>
    %13 = arith.addf %10, %12 : vector<16x128xf32>
    %cst_11 = arith.constant 0.000000e+00 : f32
    %14 = vector.broadcast %cst_11 : f32 to vector<16x128xf32>
    %15 = arith.maximumf %13, %14 : vector<16x128xf32>
    %c0_12 = arith.constant 0 : index
    %c0_13 = arith.constant 0 : index
    %16 = vector.load %arg6[%c0_12, %c0_13] : memref<8x128xbf16, #tpu.memory_space<vmem>>, vector<8x128xbf16>
    %17 = arith.truncf %15 : vector<16x128xf32> to vector<16x128xbf16>
    %cst_14 = arith.constant dense<0.000000e+00> : vector<8x16xf32>
    %18 = tpu.matmul %16, %17, %cst_14 {dimension_numbers = #tpu.dot_dimension_numbers<[1], [1], [0], [0], [0, 0, 1, 0], [], []>} : vector<8x128xbf16>, vector<16x128xbf16>, vector<8x16xf32> -> vector<8x16xf32>
    %c0_15 = arith.constant 0 : index
    %c0_16 = arith.constant 0 : index
    %19 = vector.load %arg7[%c0_15, %c0_16] : memref<8x1xf32, #tpu.memory_space<vmem>>, vector<8x1xf32>
    %20 = vector.broadcast %19 : vector<8x1xf32> to vector<8x16xf32>
    %21 = arith.addf %18, %20 : vector<8x16xf32>
    %c0_17 = arith.constant 0 : index
    %c0_18 = arith.constant 0 : index
    %22 = vector.load %arg8[%c0_17, %c0_18] : memref<8x16xf32, #tpu.memory_space<vmem>>, vector<8x16xf32>
    tpu.vector_store %arg8[%c0_17, %c0_18], %21 {strides = array<i32>} : memref<8x16xf32, #tpu.memory_space<vmem>>, vector<8x16xf32>,
    return
  }
  func.func @transform_0(%arg0: i32) -> (i32, i32) {
    %c0_i32 = arith.constant 0 : i32
    %c0_i32_0 = arith.constant 0 : i32
    return %arg0, %c0_i32 : i32, i32
  }
  func.func @transform_1(%arg0: i32) -> (i32, i32) {
    %c0_i32 = arith.constant 0 : i32
    %c0_i32_0 = arith.constant 0 : i32
    %c0_i32_1 = arith.constant 0 : i32
    return %c0_i32, %c0_i32_0 : i32, i32
  }
  func.func @transform_2(%arg0: i32) -> (i32, i32) {
    %c0_i32 = arith.constant 0 : i32
    %c0_i32_0 = arith.constant 0 : i32
    %c0_i32_1 = arith.constant 0 : i32
    return %c0_i32, %c0_i32_0 : i32, i32
  }
  func.func @transform_3(%arg0: i32) -> (i32, i32) {
    %c0_i32 = arith.constant 0 : i32
    %c0_i32_0 = arith.constant 0 : i32
    %c0_i32_1 = arith.constant 0 : i32
    return %c0_i32, %c0_i32_0 : i32, i32
  }
  func.func @transform_4(%arg0: i32) -> (i32, i32) {
    %c0_i32 = arith.constant 0 : i32
    %c0_i32_0 = arith.constant 0 : i32
    %c0_i32_1 = arith.constant 0 : i32
    return %c0_i32, %c0_i32_0 : i32, i32
  }
  func.func @transform_5(%arg0: i32) -> (i32, i32) {
    %c0_i32 = arith.constant 0 : i32
    %c0_i32_0 = arith.constant 0 : i32
    %c0_i32_1 = arith.constant 0 : i32
    return %c0_i32, %c0_i32_0 : i32, i32
  }
  func.func @transform_6(%arg0: i32) -> (i32, i32) {
    %c0_i32 = arith.constant 0 : i32
    %c0_i32_0 = arith.constant 0 : i32
    %c0_i32_1 = arith.constant 0 : i32
    return %c0_i32, %c0_i32_0 : i32, i32
  }
  func.func @transform_7(%arg0: i32) -> (i32, i32) {
    %c0_i32 = arith.constant 0 : i32
    %c0_i32_0 = arith.constant 0 : i32
    return %c0_i32, %arg0 : i32, i32
  }
}

</mosaic_0001>

<llo_original>
// kernel: tpu_custom_call.1
$region0: #{tpu_custom_call.1}
  #allocation0 [shape = 'u32[]', space=smem, size = 0x4, offset = 0x4, fixed_abs, tag = 'smem constant byte address 0x4 - core index']
  #allocation1 [shape = 'u32[144,128]{1,0:T(1,128)}', space=vmem, size = 0x12000, scoped, tag = 'internal scratch']
  %s0 = inlined_call_operand.vmem [shape: bf16[16,32], index: 0, kind: input, shape index: {}]
  %s1 = inlined_call_operand.hbm [shape: bf16[32,128], index: 1, kind: input, shape index: {}]
  %s2 = inlined_call_operand.vmem [shape: f32[1,128], index: 2, kind: input, shape index: {}]
  %s3 = inlined_call_operand.hbm [shape: bf16[128,128], index: 3, kind: input, shape index: {}]
  %s4 = inlined_call_operand.vmem [shape: f32[1,128], index: 4, kind: input, shape index: {}]
  %s5 = inlined_call_operand.vmem [shape: bf16[8,128], index: 5, kind: input, shape index: {}]
  %s6 = inlined_call_operand.vmem [shape: f32[8,1], index: 6, kind: input, shape index: {}]
  %s7 = inlined_call_operand.hbm [shape: f32[8,16], index: 7, kind: output, shape index: {}]
  %s8 = sld [smem:[#allocation0]]
  $region46: #{tpu_custom_call.1} parent=0
    _
  %s10 = ssub.s32 1, %s8
  %s11 = scalar_select 0, %s10, %s8
  $region1: #{tpu_custom_call.1} parent=0
    #allocation2 [shape = 'u8[8192]{0}', space=vmem, size = 0x2000, scoped, tag = 'input window, operand 1, single buffered']
    #allocation3 [shape = 's32[1]{0}', space=sflag, size = 0x4, scoped, tag = 'scoped memory for tpu_custom_call.1']
    #allocation4 [shape = 's32[1]{0}', space=sflag, size = 0x4, scoped, tag = 'scoped memory for tpu_custom_call.1']
    #allocation5 [shape = 'u8[32768]{0}', space=vmem, size = 0x8000, scoped, tag = 'input window, operand 3, single buffered']
    #allocation6 [shape = 's32[1]{0}', space=sflag, size = 0x4, scoped, tag = 'scoped memory for tpu_custom_call.1']
    #allocation7 [shape = 'u8[4096]{0}', space=vmem, size = 0x1000, scoped, tag = 'output window, operand 0, single buffered']
    %12 = vsyncpa [#allocation3], 0
    %13 = vsyncpa [#allocation6], 0
    %14 = vsyncpa [#allocation4], 0
    // Predicated region
    $region2: #{tpu_custom_call.1} parent=1 // pred_check
      _
    $region3: #{tpu_custom_call.1} parent=1 // pred_check_branch
      %16 = sbr.rel (0) target = $region5
    $region4: #{tpu_custom_call.1} parent=1 // pred_region
      _
    $region5: #{tpu_custom_call.1} parent=1 // pred_fallthru
      _
    // Predicated region
    $region6: #{tpu_custom_call.1} parent=1 // pred_check
      _
    $region7: #{tpu_custom_call.1} parent=1 // pred_check_branch
      %18 = sbr.rel (0) target = $region9
    $region8: #{tpu_custom_call.1} parent=1 // pred_region
      %s20 = ssub.s32 256, 256
      %21 = vsyncadd [#allocation3], %s20
      %s22 = sshll.u32 [#allocation2], 4
      %s23 = int_to_ptr.vmem [resolvable:$true] %s22
      %28 = dma.hbm_to_vmem [thread:$0]  %s1, 256, %s23, [#allocation3], 64, 64, 4
    $region9: #{tpu_custom_call.1} parent=1 // pred_fallthru
      _
    // Predicated region
    $region10: #{tpu_custom_call.1} parent=1 // pred_check
      _
    $region11: #{tpu_custom_call.1} parent=1 // pred_check_branch
      %30 = sbr.rel (0) target = $region13
    $region12: #{tpu_custom_call.1} parent=1 // pred_region
      _
    $region13: #{tpu_custom_call.1} parent=1 // pred_fallthru
      _
    // Predicated region
    $region14: #{tpu_custom_call.1} parent=1 // pred_check
      _
    $region15: #{tpu_custom_call.1} parent=1 // pred_check_branch
      %32 = sbr.rel (0) target = $region17
    $region16: #{tpu_custom_call.1} parent=1 // pred_region
      %s34 = ssub.s32 1024, 1024
      %35 = vsyncadd [#allocation6], %s34
      %s36 = sshll.u32 [#allocation5], 4
      %s37 = int_to_ptr.vmem [resolvable:$true] %s36
      %42 = dma.hbm_to_vmem [thread:$0]  %s3, 1024, %s37, [#allocation6], 64, 64, 4
    $region17: #{tpu_custom_call.1} parent=1 // pred_fallthru
      _
    // Predicated region
    $region18: #{tpu_custom_call.1} parent=1 // pred_check
      _
    $region19: #{tpu_custom_call.1} parent=1 // pred_check_branch
      %44 = sbr.rel (0) target = $region21
    $region20: #{tpu_custom_call.1} parent=1 // pred_region
      _
    $region21: #{tpu_custom_call.1} parent=1 // pred_fallthru
      _
    // Predicated region
    $region22: #{tpu_custom_call.1} parent=1 // pred_check
      _
    $region23: #{tpu_custom_call.1} parent=1 // pred_check_branch
      %46 = sbr.rel (0) target = $region25
    $region24: #{tpu_custom_call.1} parent=1 // pred_region
      _
    $region25: #{tpu_custom_call.1} parent=1 // pred_fallthru
      _
    // Predicated region
    $region26: #{tpu_custom_call.1} parent=1 // pred_check
      _
    $region27: #{tpu_custom_call.1} parent=1 // pred_check_branch
      %48 = sbr.rel (0) target = $region29
    $region28: #{tpu_custom_call.1} parent=1 // pred_region
      _
    $region29: #{tpu_custom_call.1} parent=1 // pred_fallthru
      _
    // Predicated region
    $region30: #{tpu_custom_call.1} parent=1 // pred_check
      _
    $region31: #{tpu_custom_call.1} parent=1 // pred_check_branch
      %50 = sbr.rel (0) target = $region33
    $region32: #{tpu_custom_call.1} parent=1 // pred_region
      %51 = dma.done [#allocation3], 256
    $region33: #{tpu_custom_call.1} parent=1 // pred_fallthru
      _
    // Predicated region
    $region34: #{tpu_custom_call.1} parent=1 // pred_check
      _
    $region35: #{tpu_custom_call.1} parent=1 // pred_check_branch
      %53 = sbr.rel (0) target = $region37
    $region36: #{tpu_custom_call.1} parent=1 // pred_region
      %54 = dma.done [#allocation6], 1024
    $region37: #{tpu_custom_call.1} parent=1 // pred_fallthru
      _
    %v56 = vld [vmem:[%s0] sm:$0xf]
    %v57 = vld [vmem:[%s0 + $0x4] sm:$0xf]
    %v58 = vld [vmem:[#allocation2] sm:$0xf]
    %v59 = vld [vmem:[#allocation2 + $0x4] sm:$0xf]
    %v60 = vld [vmem:[#allocation2 + $0x8] sm:$0xf]
    %v61 = vld [vmem:[#allocation2 + $0xc] sm:$0xf]
    %v62 = vld [vmem:[%s2] sm:$0x1]
    %v64 = vlaneseq
    %v65 = vshrl.u32 %v64, 7
    %v66 = vsub.s32 0, %v65
    %v67 = vrot.slane %v62, %v66
    %v71 = vunpack.c.l.b16 %v56
    %v72 = vunpack.c.l.b16 %v57
    %v73 = vpack.c.b16 %v72, %v71
    %v78 = vunpack.c.l.b16 %v58
    %v79 = vunpack.c.l.b16 %v59
    %v80 = vunpack.c.l.b16 %v60
    %v81 = vunpack.c.l.b16 %v61
    %v82 = vpack.c.b16 %v79, %v78
    %v83 = vpack.c.b16 %v81, %v80
    %vm86 = vcmask 261120
    %v88 = vsel %vm86, %v73, 0
    %90 = vmatprep.subr.bf16.mxu0 0
    %91 = vmatpush1.bf16.msra.mxu0 %v82
    %92 = vmatprep.subr.bf16.mxu0 0
    %93 = vmatpush1.bf16.msra.mxu0 %v83
    %94 = vmatprep.subr.bf16.mxu0 0
    %95 = vmatpush1.bf16.msra.mxu0 0
    %96 = vmatprep.subr.bf16.mxu0 0
    %97 = vmatpush1.bf16.msra.mxu0 0
    %98 = vmatprep.subr.bf16.mxu0 0
    %99 = vmatpush1.bf16.msra.mxu0 0
    %100 = vmatprep.subr.bf16.mxu0 0
    %101 = vmatpush1.bf16.msra.mxu0 0
    %102 = vmatprep.subr.bf16.mxu0 0
    %103 = vmatpush1.bf16.msra.mxu0 0
    %104 = vmatprep.subr.bf16.mxu0 0
    %105 = vmatpush1.bf16.msra.mxu0 0
    %106 = vmatprep.subr.bf16.mxu0 0
    %107 = vmatpush1.bf16.msra.mxu0 0
    %108 = vmatprep.subr.bf16.mxu0 0
    %109 = vmatpush1.bf16.msra.mxu0 0
    %110 = vmatprep.subr.bf16.mxu0 0
    %111 = vmatpush1.bf16.msra.mxu0 0
    %112 = vmatprep.subr.bf16.mxu0 0
    %113 = vmatpush1.bf16.msra.mxu0 0
    %114 = vmatprep.subr.bf16.mxu0 0
    %115 = vmatpush1.bf16.msra.mxu0 0
    %116 = vmatprep.subr.bf16.mxu0 0
    %117 = vmatpush1.bf16.msra.mxu0 0
    %118 = vmatprep.subr.bf16.mxu0 0
    %119 = vmatpush1.bf16.msra.mxu0 0
    %120 = vmatprep.subr.bf16.mxu0 0
    %121 = vmatpush1.bf16.msra.mxu0 0
    %122 = vmatprep.mubr.bf16.mxu0 0
    %123 = vmatmul.mubr.bf16.gmra.mrb[0].mxu0 %v88
    %v124 = vpop.f32.mrb[0].mxu0
    %v125 = vadd.f32 %v67, %v124
    %v126 = vpop.f32.mrb[0].mxu0
    %v127 = vpop.f32.mrb[0].mxu0
    %v128 = vadd.f32 %v67, %v127
    %v129 = vpop.f32.mrb[0].mxu0
    %130 = vdwg.mxu0
    %v131 = vmax.f32 %v125, 0.0
    %v132 = vmax.f32 %v128, 0.0
    %v133 = vpack.c.bf16 %v132, %v131
    %v134 = vld [vmem:[#allocation5] sm:$0xf]
    %v135 = vld [vmem:[#allocation5 + $0x4] sm:$0xf]
    %v136 = vld [vmem:[#allocation5 + $0x8] sm:$0xf]
    %v137 = vld [vmem:[#allocation5 + $0xc] sm:$0xf]
    %v138 = vld [vmem:[#allocation5 + $0x10] sm:$0xf]
    %v139 = vld [vmem:[#allocation5 + $0x14] sm:$0xf]
    %v140 = vld [vmem:[#allocation5 + $0x18] sm:$0xf]
    %v141 = vld [vmem:[#allocation5 + $0x1c] sm:$0xf]
    %v142 = vld [vmem:[#allocation5 + $0x20] sm:$0xf]
    %v143 = vld [vmem:[#allocation5 + $0x24] sm:$0xf]
    %v144 = vld [vmem:[#allocation5 + $0x28] sm:$0xf]
    %v145 = vld [vmem:[#allocation5 + $0x2c] sm:$0xf]
    %v146 = vld [vmem:[#allocation5 + $0x30] sm:$0xf]
    %v147 = vld [vmem:[#allocation5 + $0x34] sm:$0xf]
    %v148 = vld [vmem:[#allocation5 + $0x38] sm:$0xf]
    %v149 = vld [vmem:[#allocation5 + $0x3c] sm:$0xf]
    %v150 = vld [vmem:[%s4] sm:$0x1]
    %v152 = vlaneseq
    %v153 = vshrl.u32 %v152, 7
    %v154 = vsub.s32 0, %v153
    %v155 = vrot.slane %v150, %v154
    %v173 = vunpack.c.l.b16 %v134
    %v174 = vunpack.c.l.b16 %v135
    %v175 = vunpack.c.l.b16 %v136
    %v176 = vunpack.c.l.b16 %v137
    %v177 = vunpack.c.l.b16 %v138
    %v178 = vunpack.c.l.b16 %v139
    %v179 = vunpack.c.l.b16 %v140
    %v180 = vunpack.c.l.b16 %v141
    %v181 = vunpack.c.l.b16 %v142
    %v182 = vunpack.c.l.b16 %v143
    %v183 = vunpack.c.l.b16 %v144
    %v184 = vunpack.c.l.b16 %v145
    %v185 = vunpack.c.l.b16 %v146
    %v186 = vunpack.c.l.b16 %v147
    %v187 = vunpack.c.l.b16 %v148
    %v188 = vunpack.c.l.b16 %v149
    %v189 = vpack.c.b16 %v174, %v173
    %v190 = vpack.c.b16 %v176, %v175
    %v191 = vpack.c.b16 %v178, %v177
    %v192 = vpack.c.b16 %v180, %v179
    %v193 = vpack.c.b16 %v182, %v181
    %v194 = vpack.c.b16 %v184, %v183
    %v195 = vpack.c.b16 %v186, %v185
    %v196 = vpack.c.b16 %v188, %v187
    %205 = vmatprep.subr.bf16.mxu0 0
    %206 = vmatpush1.bf16.msra.mxu0 %v189
    %207 = vmatprep.subr.bf16.mxu0 0
    %208 = vmatpush1.bf16.msra.mxu0 %v190
    %209 = vmatprep.subr.bf16.mxu0 0
    %210 = vmatpush1.bf16.msra.mxu0 %v191
    %211 = vmatprep.subr.bf16.mxu0 0
    %212 = vmatpush1.bf16.msra.mxu0 %v192
    %213 = vmatprep.subr.bf16.mxu0 0
    %214 = vmatpush1.bf16.msra.mxu0 %v193
    %215 = vmatprep.subr.bf16.mxu0 0
    %216 = vmatpush1.bf16.msra.mxu0 %v194
    %217 = vmatprep.subr.bf16.mxu0 0
    %218 = vmatpush1.bf16.msra.mxu0 %v195
    %219 = vmatprep.subr.bf16.mxu0 0
    %220 = vmatpush1.bf16.msra.mxu0 %v196
    %221 = vmatprep.subr.bf16.mxu0 0
    %222 = vmatpush1.bf16.msra.mxu0 0
    %223 = vmatprep.subr.bf16.mxu0 0
    %224 = vmatpush1.bf16.msra.mxu0 0
    %225 = vmatprep.subr.bf16.mxu0 0
    %226 = vmatpush1.bf16.msra.mxu0 0
    %227 = vmatprep.subr.bf16.mxu0 0
    %228 = vmatpush1.bf16.msra.mxu0 0
    %229 = vmatprep.subr.bf16.mxu0 0
    %230 = vmatpush1.bf16.msra.mxu0 0
    %231 = vmatprep.subr.bf16.mxu0 0
    %232 = vmatpush1.bf16.msra.mxu0 0
    %233 = vmatprep.subr.bf16.mxu0 0
    %234 = vmatpush1.bf16.msra.mxu0 0
    %235 = vmatprep.subr.bf16.mxu0 0
    %236 = vmatpush1.bf16.msra.mxu0 0
    %237 = vmatprep.mubr.bf16.mxu0 0
    %238 = vmatmul.mubr.bf16.gmra.mrb[0].mxu0 %v133
    %v239 = vpop.f32.mrb[0].mxu0
    %v240 = vadd.f32 %v155, %v239
    %v241 = vpop.f32.mrb[0].mxu0
    %v242 = vpop.f32.mrb[0].mxu0
    %v243 = vadd.f32 %v155, %v242
    %v244 = vpop.f32.mrb[0].mxu0
    %245 = vdwg.mxu0
    %v246 = vmax.f32 %v240, 0.0
    %v247 = vmax.f32 %v243, 0.0
    %v248 = vld [vmem:[%s5] sm:$0xf]
    %v249 = vpack.c.bf16 %v247, %v246
    %v250 = vld [vmem:[%s6] sm:$0xff]
    %252 = vset.pattern.permute.xlu0 0
    %253 = vperm.xlu0 %252, %v250
    %v254 = vpop.permute.xlu0 %253
    %256 = vmatprep.subr.bf16.mxu0 0
    %257 = vmatpush1.bf16.xpose.msra.mxu0 %v249
    %258 = vmatprep.subr.bf16.mxu0 0
    %259 = vmatpush1.bf16.xpose.msra.mxu0 0
    %260 = vmatprep.subr.bf16.mxu0 0
    %261 = vmatpush1.bf16.xpose.msra.mxu0 0
    %262 = vmatprep.subr.bf16.mxu0 0
    %263 = vmatpush1.bf16.xpose.msra.mxu0 0
    %264 = vmatprep.subr.bf16.mxu0 0
    %265 = vmatpush1.bf16.xpose.msra.mxu0 0
    %266 = vmatprep.subr.bf16.mxu0 0
    %267 = vmatpush1.bf16.xpose.msra.mxu0 0
    %268 = vmatprep.subr.bf16.mxu0 0
    %269 = vmatpush1.bf16.xpose.msra.mxu0 0
    %270 = vmatprep.subr.bf16.mxu0 0
    %271 = vmatpush1.bf16.xpose.msra.mxu0 0
    %272 = vmatprep.subr.bf16.mxu0 0
    %273 = vmatpush1.bf16.xpose.msra.mxu0 0
    %274 = vmatprep.subr.bf16.mxu0 0
    %275 = vmatpush1.bf16.xpose.msra.mxu0 0
    %276 = vmatprep.subr.bf16.mxu0 0
    %277 = vmatpush1.bf16.xpose.msra.mxu0 0
    %278 = vmatprep.subr.bf16.mxu0 0
    %279 = vmatpush1.bf16.xpose.msra.mxu0 0
    %280 = vmatprep.subr.bf16.mxu0 0
    %281 = vmatpush1.bf16.xpose.msra.mxu0 0
    %282 = vmatprep.subr.bf16.mxu0 0
    %283 = vmatpush1.bf16.xpose.msra.mxu0 0
    %284 = vmatprep.subr.bf16.mxu0 0
    %285 = vmatpush1.bf16.xpose.msra.mxu0 0
    %286 = vmatprep.subr.bf16.mxu0 0
    %287 = vmatpush1.bf16.xpose.msra.mxu0 0
    %288 = vmatprep.mubr.bf16.mxu0 0
    %289 = vmatmul.mubr.bf16.gmra.mrb[0].mxu0 %v248
    %v290 = vpop.f32.mrb[0].mxu0
    %v291 = vadd.f32 %v254, %v290
    %v292 = vpop.f32.mrb[0].mxu0
    %v293 = vpop.f32.mrb[0].mxu0
    %v294 = vpop.f32.mrb[0].mxu0
    %295 = vdwg.mxu0
    %vm296 = vcmask 130048
    %297 = vst.msk [vmem:[#allocation7] sm:$0xff] %vm296, %v291
    // Predicated region
    $region38: #{tpu_custom_call.1} parent=1 // pred_check
      _
    $region39: #{tpu_custom_call.1} parent=1 // pred_check_branch
      %299 = sbr.rel (0) target = $region41
    $region40: #{tpu_custom_call.1} parent=1 // pred_region
      %s301 = ssub.s32 128, 128
      %302 = vsyncadd [#allocation4], %s301
      %s304 = sshll.u32 [#allocation7], 4
      %s305 = int_to_ptr.vmem [resolvable:$true] %s304
      %307 = dma.vmem_to_hbm [thread:$0]  %s305, 128, %s7, [#allocation4]
    $region41: #{tpu_custom_call.1} parent=1 // pred_fallthru
      _
    // Predicated region
    $region42: #{tpu_custom_call.1} parent=1 // pred_check
      _
    $region43: #{tpu_custom_call.1} parent=1 // pred_check_branch
      %309 = sbr.rel (0) target = $region45
    $region44: #{tpu_custom_call.1} parent=1 // pred_region
      %310 = dma.done [#allocation4], 128
    $region45: #{tpu_custom_call.1} parent=1 // pred_fallthru
      _
    %311 = vsyncpa [#allocation3], 1
    %312 = vsyncpa [#allocation6], 1
    %313 = vsyncpa [#allocation4], 1

</llo_original>
